<compile_context>
chip_gen: v6e
topology: v6e:2x2x1
jax: 0.10.0
libtpu: 0.0.40
codegen_flags: <defaults>
</compile_context>

<pallas_src>
import jax
import jax.numpy as jnp
from jax.experimental import pallas as pl
from jax.experimental.pallas import tpu as pltpu


_FOLD = 8  # rows folded into the lane axis (= one f32 sublane group)


def _predictor_folded_kernel(data_ref, w_ref, mask_ref, e_ref, out_ref):
    # data_ref : (tmg, FOLD*D)     FOLD rows packed along lanes
    # w_ref    : (FOLD*D, FOLD*T)  block-diagonal replicated W^T (resident)
    # mask_ref : (tmg, FOLD)       per-row non-pad mask, folded
    # e_ref    : (FOLD, FOLD*T)    constant expansion matrix (resident)
    # out_ref  : (tmg, FOLD*T)     FOLD output rows packed along lanes
    y = jnp.dot(data_ref[...], w_ref[...], preferred_element_type=jnp.float32)
    # Broadcast each row's mask across its T output lanes via a tiny MXU matmul.
    m = jnp.dot(mask_ref[...], e_ref[...], preferred_element_type=jnp.float32)
    out_ref[...] = (y * m).astype(out_ref.dtype)


def _predictor_rows_kernel(data_ref, w_ref, mask_ref, out_ref):
    # Fallback (lane-sparse) path for BS % FOLD != 0 — still no wrapper padding.
    y = jnp.dot(data_ref[...], w_ref[...], preferred_element_type=jnp.float32)
    out_ref[...] = (y * mask_ref[...]).astype(out_ref.dtype)


def _vmem_budget_bytes():
    """(tile budget, scoped-VMEM limit) — chip aware (v7x has half the VMEM)."""
    try:
        info = pltpu.get_tpu_info()
        cap = int(getattr(info, "vmem_capacity_bytes", 64 * 1024 * 1024))
    except Exception:
        cap = 64 * 1024 * 1024  # conservative: v7x physical VMEM
    budget = min(cap // 3, 40 * 1024 * 1024)                    # double-buffered tiles
    limit = min((cap * 3) // 4, budget + 16 * 1024 * 1024)      # + resident weight/slop
    return int(budget), int(limit)


def _pick_tiles(n_rows, per_row_bytes, budget_bytes, max_rows=8192):
    """Largest row tile within the (lane-padded, double-buffered) VMEM budget,
    a multiple of 8 sublanes (or full extent), clamped so >=2 grid steps exist
    when possible (v7x 2-TensorCore sharding)."""
    tm = budget_bytes // max(per_row_bytes, 1)
    tm = max(8, min(int(tm), max_rows))
    if n_rows > 8:
        half = ((pl.cdiv(n_rows, 2) + 7) // 8) * 8
        tm = min(tm, max(8, half))
    if tm >= n_rows:
        return int(n_rows)          # single full-extent block
    return int(max(8, (tm // 8) * 8))


def predictor_forward(data, weight, non_pad_mask, *, use_bf16=False):
    """data: (B, S, D); weight: (T, D) (PyTorch nn.Linear layout); non_pad_mask: (B, S, 1).
    Returns (B, S, T) f32 == (data @ weight.T) * non_pad_mask."""
    B, S, D = data.shape
    T = weight.shape[0]
    BS = B * S
    budget, vmem_limit = _vmem_budget_bytes()

    in_dtype = jnp.bfloat16 if use_bf16 else data.dtype
    isz = jnp.dtype(in_dtype).itemsize
    w_t = weight.T.astype(in_dtype)  # (D, T)
    params = pltpu.CompilerParams(
        dimension_semantics=("parallel",), vmem_limit_bytes=vmem_limit)

    if BS % _FOLD == 0:
        # ---- lane-dense folded path -------------------------------------------
        BSg = BS // _FOLD
        data_f = data.reshape(BSg, _FOLD * D).astype(in_dtype)        # free row-major reshape
        mask_f = non_pad_mask.reshape(BSg, _FOLD).astype(jnp.float32)
        w_big = jnp.kron(jnp.eye(_FOLD, dtype=in_dtype), w_t)          # (8D, 8T) block-diag
        e_mat = jnp.kron(jnp.eye(_FOLD, dtype=jnp.float32),
                         jnp.ones((1, T), dtype=jnp.float32))          # (8, 8T) mask expander

        per_grp = 2 * (_FOLD * D * isz               # data tile
                       + max(_FOLD, 128) * 4         # mask tile (lane padded)
                       + max(_FOLD * T, 128) * 4)    # out tile
        tmg = _pick_tiles(BSg, per_grp, budget)
        grid = (pl.cdiv(BSg, tmg),)

        cost = pl.CostEstimate(
            flops=2 * BS * D * T + 2 * BS * T,
            transcendentals=0,
            bytes_accessed=int(data_f.size * isz + mask_f.size * 4
                               + w_big.size * isz + e_mat.size * 4
                               + BSg * _FOLD * T * 4))

        out_f = pl.pallas_call(
            _predictor_folded_kernel,
            out_shape=jax.ShapeDtypeStruct((BSg, _FOLD * T), jnp.float32),
            grid_spec=pltpu.PrefetchScalarGridSpec(
                num_scalar_prefetch=0,
                grid=grid,
                in_specs=[
                    pl.BlockSpec((tmg, _FOLD * D), lambda i: (i, 0)),          # data tile
                    pl.BlockSpec((_FOLD * D, _FOLD * T), lambda i: (0, 0)),    # resident weight
                    pl.BlockSpec((tmg, _FOLD), lambda i: (i, 0)),              # mask tile
                    pl.BlockSpec((_FOLD, _FOLD * T), lambda i: (0, 0)),        # resident expander
                ],
                out_specs=pl.BlockSpec((tmg, _FOLD * T), lambda i: (i, 0)),
            ),
            compiler_params=params,
            cost_estimate=cost,
        )(data_f, w_big, mask_f, e_mat)
        return out_f.reshape(B, S, T)

    # ---- fallback path (BS not a multiple of 8) — Pallas clips the partial block
    data2d = data.reshape(BS, D).astype(in_dtype)
    mask2d = non_pad_mask.reshape(BS, 1).astype(jnp.float32)
    per_row = 2 * (max(D, 128) * isz + 128 * 4 + 128 * 4)   # lane-padded, double-buffered
    tm = _pick_tiles(BS, per_row, budget)
    grid = (pl.cdiv(BS, tm),)

    cost = pl.CostEstimate(
        flops=2 * BS * D * T,
        transcendentals=0,
        bytes_accessed=int(data2d.size * isz + mask2d.size * 4
                           + w_t.size * isz + BS * T * 4))

    out2d = pl.pallas_call(
        _predictor_rows_kernel,
        out_shape=jax.ShapeDtypeStruct((BS, T), jnp.float32),
        grid_spec=pltpu.PrefetchScalarGridSpec(
            num_scalar_prefetch=0,
            grid=grid,
            in_specs=[
                pl.BlockSpec((tm, D), lambda i: (i, 0)),      # data tile
                pl.BlockSpec((D, T), lambda i: (0, 0)),       # resident weight
                pl.BlockSpec((tm, 1), lambda i: (i, 0)),      # mask tile
            ],
            out_specs=pl.BlockSpec((tm, T), lambda i: (i, 0)),
        ),
        compiler_params=params,
        cost_estimate=cost,
    )(data2d, w_t, mask2d)
    return out2d.reshape(B, S, T)


if __name__ == "__main__":
    # Small shapes consistent with the module: batch=2, seq=8, hidden dim=32, num_types=16
    B, S, D, T = 2, 8, 32, 16

    key = jax.random.PRNGKey(0)
    k_data, k_w, k_mask = jax.random.split(key, 3)

    data = jax.random.normal(k_data, (B, S, D), dtype=jnp.float32)

    # Deterministic xavier_normal_ init for nn.Linear(dim, num_types, bias=False):
    xavier_std = (2.0 / (D + T)) ** 0.5
    weight = xavier_std * jax.random.normal(k_w, (T, D), dtype=jnp.float32)

    # non_pad_mask: (B, S, 1) float {0, 1} — last two positions of batch 1 padded.
    mask = jnp.ones((B, S, 1), dtype=jnp.float32)
    mask = mask.at[1, -2:, :].set(0.0)

    # Folded (lane-dense) path: B*S = 16 is a multiple of 8.
    out = predictor_forward(data, weight, mask)
    jax.block_until_ready(out)
    ref = (data @ weight.T) * mask
    assert out.shape == (B, S, T)
    assert jnp.allclose(out, ref, atol=2e-2, rtol=2e-2), "folded f32 path mismatch"

    # Fallback path: B*S = 111 not a multiple of 8 (no wrapper-side padding).
    B2, S2 = 3, 37
    d2 = jax.random.normal(jax.random.PRNGKey(1), (B2, S2, D), dtype=jnp.float32)
    m2 = (jax.random.uniform(jax.random.PRNGKey(2), (B2, S2, 1)) > 0.2).astype(jnp.float32)
    out2 = predictor_forward(d2, weight, m2)
    jax.block_until_ready(out2)
    ref2 = (d2 @ weight.T) * m2
    assert jnp.allclose(out2, ref2, atol=2e-2, rtol=2e-2), "fallback path mismatch"

    # Optional bf16 read path (halved HBM read stream; f32 accumulate + f32 mask).
    out_bf = predictor_forward(data, weight, mask, use_bf16=True)
    jax.block_until_ready(out_bf)
    assert jnp.allclose(out_bf, ref, atol=1e-1, rtol=5e-2), "bf16 path mismatch"

    print("KERNEL_OK")
</pallas_src>

<mosaic_0001>
module attributes {stable_mosaic.version = 11 : i64} {
  func.func @_predictor_folded_kernel(%arg0: i32, %arg1: memref<2x256xf32, #tpu.memory_space<vmem>>, %arg2: memref<256x128xf32, #tpu.memory_space<vmem>>, %arg3: memref<2x8xf32, #tpu.memory_space<vmem>>, %arg4: memref<8x128xf32, #tpu.memory_space<vmem>>, %arg5: memref<2x128xf32, #tpu.memory_space<vmem>>) attributes {dimension_semantics = [#tpu.dimension_semantics<parallel>], iteration_bounds = array<i64: 1>, scalar_prefetch = 0 : i64, scratch_operands = 0 : i64, tpu.core_type = #tpu.core_type<tc>, window_params = [{transform_indices = @transform_0, window_bounds = array<i64: 2, 256>}, {pipeline_mode = #tpu.pipeline_mode<synchronous>, transform_indices = @transform_1, window_bounds = array<i64: 256, 128>}, {transform_indices = @transform_2, window_bounds = array<i64: 2, 8>}, {pipeline_mode = #tpu.pipeline_mode<synchronous>, transform_indices = @transform_3, window_bounds = array<i64: 8, 128>}, {transform_indices = @transform_4, window_bounds = array<i64: 2, 128>}]} {
    %c0 = arith.constant 0 : index
    %c0_0 = arith.constant 0 : index
    %0 = vector.load %arg1[%c0, %c0_0] : memref<2x256xf32, #tpu.memory_space<vmem>>, vector<2x256xf32>
    %c0_1 = arith.constant 0 : index
    %c0_2 = arith.constant 0 : index
    %1 = vector.load %arg2[%c0_1, %c0_2] : memref<256x128xf32, #tpu.memory_space<vmem>>, vector<256x128xf32>
    %cst = arith.constant dense<0.000000e+00> : vector<2x128xf32>
    %2 = tpu.matmul %0, %1, %cst {dimension_numbers = #tpu.dot_dimension_numbers<[1], [0], [0], [1], [0, 0, 1, 1], [], []>} : vector<2x256xf32>, vector<256x128xf32>, vector<2x128xf32> -> vector<2x128xf32>
    %c0_3 = arith.constant 0 : index
    %c0_4 = arith.constant 0 : index
    %3 = vector.load %arg3[%c0_3, %c0_4] : memref<2x8xf32, #tpu.memory_space<vmem>>, vector<2x8xf32>
    %c0_5 = arith.constant 0 : index
    %c0_6 = arith.constant 0 : index
    %4 = vector.load %arg4[%c0_5, %c0_6] : memref<8x128xf32, #tpu.memory_space<vmem>>, vector<8x128xf32>
    %cst_7 = arith.constant dense<0.000000e+00> : vector<2x128xf32>
    %5 = tpu.matmul %3, %4, %cst_7 {dimension_numbers = #tpu.dot_dimension_numbers<[1], [0], [0], [1], [0, 0, 1, 1], [], []>} : vector<2x8xf32>, vector<8x128xf32>, vector<2x128xf32> -> vector<2x128xf32>
    %6 = arith.mulf %2, %5 : vector<2x128xf32>
    %c0_8 = arith.constant 0 : index
    %c0_9 = arith.constant 0 : index
    %7 = vector.load %arg5[%c0_8, %c0_9] : memref<2x128xf32, #tpu.memory_space<vmem>>, vector<2x128xf32>
    tpu.vector_store %arg5[%c0_8, %c0_9], %6 {strides = array<i32>} : memref<2x128xf32, #tpu.memory_space<vmem>>, vector<2x128xf32>,
    return
  }
  func.func @transform_0(%arg0: i32) -> (i32, i32) {
    %c0_i32 = arith.constant 0 : i32
    %c0_i32_0 = arith.constant 0 : i32
    return %arg0, %c0_i32 : i32, i32
  }
  func.func @transform_1(%arg0: i32) -> (i32, i32) {
    %c0_i32 = arith.constant 0 : i32
    %c0_i32_0 = arith.constant 0 : i32
    %c0_i32_1 = arith.constant 0 : i32
    return %c0_i32, %c0_i32_0 : i32, i32
  }
  func.func @transform_2(%arg0: i32) -> (i32, i32) {
    %c0_i32 = arith.constant 0 : i32
    %c0_i32_0 = arith.constant 0 : i32
    return %arg0, %c0_i32 : i32, i32
  }
  func.func @transform_3(%arg0: i32) -> (i32, i32) {
    %c0_i32 = arith.constant 0 : i32
    %c0_i32_0 = arith.constant 0 : i32
    %c0_i32_1 = arith.constant 0 : i32
    return %c0_i32, %c0_i32_0 : i32, i32
  }
  func.func @transform_4(%arg0: i32) -> (i32, i32) {
    %c0_i32 = arith.constant 0 : i32
    %c0_i32_0 = arith.constant 0 : i32
    return %arg0, %c0_i32 : i32, i32
  }
}

</mosaic_0001>

<llo_original>
// kernel: tpu_custom_call.1
$region0: #{tpu_custom_call.1}
  #allocation0 [shape = 'u32[]', space=smem, size = 0x4, offset = 0x4, fixed_abs, tag = 'smem constant byte address 0x4 - core index']
  #allocation1 [shape = 'u32[144,128]{1,0:T(1,128)}', space=vmem, size = 0x12000, scoped, tag = 'internal scratch']
  %s0 = inlined_call_operand.hbm [shape: f32[2,256], index: 0, kind: input, shape index: {}]
  %s1 = inlined_call_operand.hbm [shape: f32[256,128], index: 1, kind: input, shape index: {}]
  %s2 = inlined_call_operand.vmem [shape: f32[2,8], index: 2, kind: input, shape index: {}]
  %s3 = inlined_call_operand.hbm [shape: f32[8,128], index: 3, kind: input, shape index: {}]
  %s4 = inlined_call_operand.hbm [shape: f32[2,128], index: 4, kind: output, shape index: {}]
  %s5 = sld [smem:[#allocation0]]
  $region38: #{tpu_custom_call.1} parent=0
    _
  %s7 = ssub.s32 1, %s5
  %s8 = scalar_select 0, %s7, %s5
  $region1: #{tpu_custom_call.1} parent=0
    #allocation2 [shape = 'u8[2048]{0}', space=vmem, size = 0x800, scoped, tag = 'input window, operand 0, single buffered']
    #allocation3 [shape = 's32[1]{0}', space=sflag, size = 0x4, scoped, tag = 'scoped memory for tpu_custom_call.1']
    #allocation4 [shape = 's32[1]{0}', space=sflag, size = 0x4, scoped, tag = 'scoped memory for tpu_custom_call.1']
    #allocation5 [shape = 'u8[131072]{0}', space=vmem, size = 0x20000, scoped, tag = 'input window, operand 1, single buffered']
    #allocation6 [shape = 's32[1]{0}', space=sflag, size = 0x4, scoped, tag = 'scoped memory for tpu_custom_call.1']
    #allocation7 [shape = 'u8[4096]{0}', space=vmem, size = 0x1000, scoped, tag = 'input window, operand 3, single buffered']
    #allocation8 [shape = 'u8[1024]{0}', space=vmem, size = 0x400, scoped, tag = 'output window, operand 0, single buffered']
    %9 = vsyncpa [#allocation3], 0
    %10 = vsyncpa [#allocation6], 0
    %11 = vsyncpa [#allocation4], 0
    // Predicated region
    $region2: #{tpu_custom_call.1} parent=1 // pred_check
      _
    $region3: #{tpu_custom_call.1} parent=1 // pred_check_branch
      %13 = sbr.rel (0) target = $region5
    $region4: #{tpu_custom_call.1} parent=1 // pred_region
      %s15 = ssub.s32 64, 64
      %16 = vsyncadd [#allocation3], %s15
      %s18 = sshll.u32 [#allocation2], 4
      %s19 = int_to_ptr.vmem [resolvable:$true] %s18
      %21 = dma.hbm_to_vmem [thread:$0]  %s0, 64, %s19, [#allocation3]
    $region5: #{tpu_custom_call.1} parent=1 // pred_fallthru
      _
    // Predicated region
    $region6: #{tpu_custom_call.1} parent=1 // pred_check
      _
    $region7: #{tpu_custom_call.1} parent=1 // pred_check_branch
      %23 = sbr.rel (0) target = $region9
    $region8: #{tpu_custom_call.1} parent=1 // pred_region
      %s25 = ssub.s32 4096, 4096
      %26 = vsyncadd [#allocation6], %s25
      %s27 = sshll.u32 [#allocation5], 4
      %s28 = int_to_ptr.vmem [resolvable:$true] %s27
      %33 = dma.hbm_to_vmem [thread:$0]  %s1, 4096, %s28, [#allocation6], 128, 128, 8
    $region9: #{tpu_custom_call.1} parent=1 // pred_fallthru
      _
    // Predicated region
    $region10: #{tpu_custom_call.1} parent=1 // pred_check
      _
    $region11: #{tpu_custom_call.1} parent=1 // pred_check_branch
      %35 = sbr.rel (0) target = $region13
    $region12: #{tpu_custom_call.1} parent=1 // pred_region
      _
    $region13: #{tpu_custom_call.1} parent=1 // pred_fallthru
      _
    // Predicated region
    $region14: #{tpu_custom_call.1} parent=1 // pred_check
      _
    $region15: #{tpu_custom_call.1} parent=1 // pred_check_branch
      %37 = sbr.rel (0) target = $region17
    $region16: #{tpu_custom_call.1} parent=1 // pred_region
      %s39 = ssub.s32 128, 128
      %40 = vsyncadd [#allocation6], %s39
      %s42 = sshll.u32 [#allocation7], 4
      %s43 = int_to_ptr.vmem [resolvable:$true] %s42
      %45 = dma.hbm_to_vmem [thread:$0]  %s3, 128, %s43, [#allocation6]
    $region17: #{tpu_custom_call.1} parent=1 // pred_fallthru
      _
    // Predicated region
    $region18: #{tpu_custom_call.1} parent=1 // pred_check
      _
    $region19: #{tpu_custom_call.1} parent=1 // pred_check_branch
      %47 = sbr.rel (0) target = $region21
    $region20: #{tpu_custom_call.1} parent=1 // pred_region
      %48 = dma.done [#allocation3], 64
    $region21: #{tpu_custom_call.1} parent=1 // pred_fallthru
      _
    // Predicated region
    $region22: #{tpu_custom_call.1} parent=1 // pred_check
      _
    $region23: #{tpu_custom_call.1} parent=1 // pred_check_branch
      %50 = sbr.rel (0) target = $region25
    $region24: #{tpu_custom_call.1} parent=1 // pred_region
      %51 = dma.done [#allocation6], 4096
    $region25: #{tpu_custom_call.1} parent=1 // pred_fallthru
      _
    // Predicated region
    $region26: #{tpu_custom_call.1} parent=1 // pred_check
      _
    $region27: #{tpu_custom_call.1} parent=1 // pred_check_branch
      %53 = sbr.rel (0) target = $region29
    $region28: #{tpu_custom_call.1} parent=1 // pred_region
      %54 = dma.done [#allocation6], 128
    $region29: #{tpu_custom_call.1} parent=1 // pred_fallthru
      _
    %v55 = vld [vmem:[#allocation2] sm:$0xf]
    %v56 = vld [vmem:[#allocation5] sm:$0xff]
    %v57 = vld [vmem:[#allocation5 + $0x8] sm:$0xff]
    %v58 = vld [vmem:[#allocation5 + $0x10] sm:$0xff]
    %v59 = vld [vmem:[#allocation5 + $0x18] sm:$0xff]
    %v60 = vld [vmem:[#allocation5 + $0x20] sm:$0xff]
    %v61 = vld [vmem:[#allocation5 + $0x28] sm:$0xff]
    %v62 = vld [vmem:[#allocation5 + $0x30] sm:$0xff]
    %v63 = vld [vmem:[#allocation5 + $0x38] sm:$0xff]
    %v64 = vld [vmem:[#allocation5 + $0x40] sm:$0xff]
    %v65 = vld [vmem:[#allocation5 + $0x48] sm:$0xff]
    %v66 = vld [vmem:[#allocation5 + $0x50] sm:$0xff]
    %v67 = vld [vmem:[#allocation5 + $0x58] sm:$0xff]
    %v68 = vld [vmem:[#allocation5 + $0x60] sm:$0xff]
    %v69 = vld [vmem:[#allocation5 + $0x68] sm:$0xff]
    %v70 = vld [vmem:[#allocation5 + $0x70] sm:$0xff]
    %v71 = vld [vmem:[#allocation5 + $0x78] sm:$0xff]
    %v72 = vld [vmem:[#allocation5 + $0x80] sm:$0xff]
    %v73 = vld [vmem:[#allocation5 + $0x88] sm:$0xff]
    %v74 = vld [vmem:[#allocation5 + $0x90] sm:$0xff]
    %v75 = vld [vmem:[#allocation5 + $0x98] sm:$0xff]
    %v76 = vld [vmem:[#allocation5 + $0xa0] sm:$0xff]
    %v77 = vld [vmem:[#allocation5 + $0xa8] sm:$0xff]
    %v78 = vld [vmem:[#allocation5 + $0xb0] sm:$0xff]
    %v79 = vld [vmem:[#allocation5 + $0xb8] sm:$0xff]
    %v80 = vld [vmem:[#allocation5 + $0xc0] sm:$0xff]
    %v81 = vld [vmem:[#allocation5 + $0xc8] sm:$0xff]
    %v82 = vld [vmem:[#allocation5 + $0xd0] sm:$0xff]
    %v83 = vld [vmem:[#allocation5 + $0xd8] sm:$0xff]
    %v84 = vld [vmem:[#allocation5 + $0xe0] sm:$0xff]
    %v85 = vld [vmem:[#allocation5 + $0xe8] sm:$0xff]
    %v86 = vld [vmem:[#allocation5 + $0xf0] sm:$0xff]
    %v87 = vld [vmem:[#allocation5 + $0xf8] sm:$0xff]
    %v90 = vunpack.c.l.s4 1983009808
    %v91 = vunpack.c.0.s8 %v90
    %v92 = vlaneseq
    %v93 = vshrl.u32 %v92, 7
    %v94 = vsub.s32 %v91, %v93
    %v95 = vrot.slane %v55, %v94
    %v96 = vcombine.high %v95, %v95
    %99 = vmatprep.subr.mxu0 0.0
    %100 = vmatpush1.msra.mxu0 %v71
    %101 = vmatprep.subr.mxu0 0.0
    %102 = vmatpush1.msra.mxu0 %v70
    %103 = vmatprep.subr.mxu0 0.0
    %104 = vmatpush1.msra.mxu0 %v69
    %105 = vmatprep.subr.mxu0 0.0
    %106 = vmatpush1.msra.mxu0 %v68
    %107 = vmatprep.subr.mxu0 0.0
    %108 = vmatpush1.msra.mxu0 %v67
    %109 = vmatprep.subr.mxu0 0.0
    %110 = vmatpush1.msra.mxu0 %v66
    %111 = vmatprep.subr.mxu0 0.0
    %112 = vmatpush1.msra.mxu0 %v65
    %113 = vmatprep.subr.mxu0 0.0
    %114 = vmatpush1.msra.mxu0 %v64
    %115 = vmatprep.subr.mxu0 0.0
    %116 = vmatpush1.msra.mxu0 %v63
    %117 = vmatprep.subr.mxu0 0.0
    %118 = vmatpush1.msra.mxu0 %v62
    %119 = vmatprep.subr.mxu0 0.0
    %120 = vmatpush1.msra.mxu0 %v61
    %121 = vmatprep.subr.mxu0 0.0
    %122 = vmatpush1.msra.mxu0 %v60
    %123 = vmatprep.subr.mxu0 0.0
    %124 = vmatpush1.msra.mxu0 %v59
    %125 = vmatprep.subr.mxu0 0.0
    %126 = vmatpush1.msra.mxu0 %v58
    %127 = vmatprep.subr.mxu0 0.0
    %128 = vmatpush1.msra.mxu0 %v57
    %129 = vmatprep.subr.mxu0 0.0
    %130 = vmatpush1.msra.mxu0 %v56
    %131 = vmatprep.subr.mxu0 0.0
    %132 = vmatpush2.msra.mxu0 %v87
    %133 = vmatprep.subr.mxu0 0.0
    %134 = vmatpush2.msra.mxu0 %v86
    %135 = vmatprep.subr.mxu0 0.0
    %136 = vmatpush2.msra.mxu0 %v85
    %137 = vmatprep.subr.mxu0 0.0
    %138 = vmatpush2.msra.mxu0 %v84
    %139 = vmatprep.subr.mxu0 0.0
    %140 = vmatpush2.msra.mxu0 %v83
    %141 = vmatprep.subr.mxu0 0.0
    %142 = vmatpush2.msra.mxu0 %v82
    %143 = vmatprep.subr.mxu0 0.0
    %144 = vmatpush2.msra.mxu0 %v81
    %145 = vmatprep.subr.mxu0 0.0
    %146 = vmatpush2.msra.mxu0 %v80
    %147 = vmatprep.subr.mxu0 0.0
    %148 = vmatpush2.msra.mxu0 %v79
    %149 = vmatprep.subr.mxu0 0.0
    %150 = vmatpush2.msra.mxu0 %v78
    %151 = vmatprep.subr.mxu0 0.0
    %152 = vmatpush2.msra.mxu0 %v77
    %153 = vmatprep.subr.mxu0 0.0
    %154 = vmatpush2.msra.mxu0 %v76
    %155 = vmatprep.subr.mxu0 0.0
    %156 = vmatpush2.msra.mxu0 %v75
    %157 = vmatprep.subr.mxu0 0.0
    %158 = vmatpush2.msra.mxu0 %v74
    %159 = vmatprep.subr.mxu0 0.0
    %160 = vmatpush2.msra.mxu0 %v73
    %161 = vmatprep.subr.mxu0 0.0
    %162 = vmatpush2.msra.mxu0 %v72
    %163 = vmatprep.mubr.f32.mxu0 %v96
    %164 = vmatmul.mubr.f32.gmra.mxu0 %v95
    %v165 = vpop.f32.mrf.mxu0
    %v166 = vadd.f32 0.0, %v165
    %v167 = vpop.f32.mrf.mxu0
    %168 = vdwg.mxu0
    %v169 = vld [vmem:[%s2] sm:$0x3]
    %v170 = vld [vmem:[#allocation7] sm:$0xff]
    %vm171 = vcmask 64512
    %v173 = vsel %vm171, %v169, 0
    %175 = vmatprep.subr.mxu0 0.0
    %176 = vmatpush1.msra.mxu0 0.0
    %177 = vmatprep.subr.mxu0 0.0
    %178 = vmatpush1.msra.mxu0 0.0
    %179 = vmatprep.subr.mxu0 0.0
    %180 = vmatpush1.msra.mxu0 0.0
    %181 = vmatprep.subr.mxu0 0.0
    %182 = vmatpush1.msra.mxu0 0.0
    %183 = vmatprep.subr.mxu0 0.0
    %184 = vmatpush1.msra.mxu0 0.0
    %185 = vmatprep.subr.mxu0 0.0
    %186 = vmatpush1.msra.mxu0 0.0
    %187 = vmatprep.subr.mxu0 0.0
    %188 = vmatpush1.msra.mxu0 0.0
    %189 = vmatprep.subr.mxu0 0.0
    %190 = vmatpush1.msra.mxu0 0.0
    %191 = vmatprep.subr.mxu0 0.0
    %192 = vmatpush1.msra.mxu0 0.0
    %193 = vmatprep.subr.mxu0 0.0
    %194 = vmatpush1.msra.mxu0 0.0
    %195 = vmatprep.subr.mxu0 0.0
    %196 = vmatpush1.msra.mxu0 0.0
    %197 = vmatprep.subr.mxu0 0.0
    %198 = vmatpush1.msra.mxu0 0.0
    %199 = vmatprep.subr.mxu0 0.0
    %200 = vmatpush1.msra.mxu0 0.0
    %201 = vmatprep.subr.mxu0 0.0
    %202 = vmatpush1.msra.mxu0 0.0
    %203 = vmatprep.subr.mxu0 0.0
    %204 = vmatpush1.msra.mxu0 0.0
    %205 = vmatprep.subr.mxu0 0.0
    %206 = vmatpush1.msra.mxu0 %v170
    %207 = vmatprep.subr.mxu0 0.0
    %208 = vmatpush2.msra.mxu0 0.0
    %209 = vmatprep.subr.mxu0 0.0
    %210 = vmatpush2.msra.mxu0 0.0
    %211 = vmatprep.subr.mxu0 0.0
    %212 = vmatpush2.msra.mxu0 0.0
    %213 = vmatprep.subr.mxu0 0.0
    %214 = vmatpush2.msra.mxu0 0.0
    %215 = vmatprep.subr.mxu0 0.0
    %216 = vmatpush2.msra.mxu0 0.0
    %217 = vmatprep.subr.mxu0 0.0
    %218 = vmatpush2.msra.mxu0 0.0
    %219 = vmatprep.subr.mxu0 0.0
    %220 = vmatpush2.msra.mxu0 0.0
    %221 = vmatprep.subr.mxu0 0.0
    %222 = vmatpush2.msra.mxu0 0.0
    %223 = vmatprep.subr.mxu0 0.0
    %224 = vmatpush2.msra.mxu0 0.0
    %225 = vmatprep.subr.mxu0 0.0
    %226 = vmatpush2.msra.mxu0 0.0
    %227 = vmatprep.subr.mxu0 0.0
    %228 = vmatpush2.msra.mxu0 0.0
    %229 = vmatprep.subr.mxu0 0.0
    %230 = vmatpush2.msra.mxu0 0.0
    %231 = vmatprep.subr.mxu0 0.0
    %232 = vmatpush2.msra.mxu0 0.0
    %233 = vmatprep.subr.mxu0 0.0
    %234 = vmatpush2.msra.mxu0 0.0
    %235 = vmatprep.subr.mxu0 0.0
    %236 = vmatpush2.msra.mxu0 0.0
    %237 = vmatprep.subr.mxu0 0.0
    %238 = vmatpush2.msra.mxu0 0.0
    %239 = vmatprep.mubr.f32.mxu0 0.0
    %240 = vmatmul.mubr.f32.gmra.mxu0 %v173
    %v241 = vpop.f32.mrf.mxu0
    %v242 = vadd.f32 0.0, %v241
    %v243 = vpop.f32.mrf.mxu0
    %244 = vdwg.mxu0
    %v245 = vmul.f32 %v166, %v242
    %246 = vst [vmem:[#allocation8] sm:$0x3] %v245
    // Predicated region
    $region30: #{tpu_custom_call.1} parent=1 // pred_check
      _
    $region31: #{tpu_custom_call.1} parent=1 // pred_check_branch
      %248 = sbr.rel (0) target = $region33
    $region32: #{tpu_custom_call.1} parent=1 // pred_region
      %s250 = ssub.s32 32, 32
      %251 = vsyncadd [#allocation4], %s250
      %s253 = sshll.u32 [#allocation8], 4
      %s254 = int_to_ptr.vmem [resolvable:$true] %s253
      %256 = dma.vmem_to_hbm [thread:$0]  %s254, 32, %s4, [#allocation4]
    $region33: #{tpu_custom_call.1} parent=1 // pred_fallthru
      _
    // Predicated region
    $region34: #{tpu_custom_call.1} parent=1 // pred_check
      _
    $region35: #{tpu_custom_call.1} parent=1 // pred_check_branch
      %258 = sbr.rel (0) target = $region37
    $region36: #{tpu_custom_call.1} parent=1 // pred_region
      %259 = dma.done [#allocation4], 32
    $region37: #{tpu_custom_call.1} parent=1 // pred_fallthru
      _
    %260 = vsyncpa [#allocation3], 1
    %261 = vsyncpa [#allocation6], 1
    %262 = vsyncpa [#allocation4], 1

</llo_original>
